<compile_context>
chip_gen: v5e
topology: v5e:2x2
jax: 0.10.0
libtpu: 0.0.40
codegen_flags: <defaults>
</compile_context>

<pallas_src>
import math
from functools import partial

import jax
import jax.numpy as jnp
from jax.experimental import pallas as pl
from jax.experimental.pallas import tpu as pltpu

LANES = 128
SUBLANES = 8


def _loss_size_kernel(x_ref, y_ref, out_ref, *, tm, rows, kb):
    """Accumulate smooth-L1 (beta=1) of one (TM,128) tile into the per-partition
    (8,128) f32 output slab (output block is the accumulator)."""
    p = pl.program_id(0)   # parallel partition (one per TensorCore on v7x)
    k = pl.program_id(1)   # sequential block index inside the partition

    @pl.when(k == 0)
    def _init():
        out_ref[...] = jnp.zeros_like(out_ref)

    # Global row-block handled by this step (unclamped: dummy trailing steps get
    # valid == 0 and contribute exactly nothing).
    b = p * kb + k
    valid = jnp.clip(rows - b * tm, 0, tm)   # in-bounds rows in this tile

    # Native-dtype DMA, per-tile upcast (halves HBM traffic for bf16 inputs).
    x = x_ref[...].astype(jnp.float32)
    y = y_ref[...].astype(jnp.float32)
    diff = x - y
    abs_d = jnp.abs(diff)
    # Branch-free smooth-L1 (beta=1): 0.5*d^2 if |d|<1 else |d|-0.5.
    t = jnp.minimum(abs_d, 1.0)
    elem = t * (abs_d - 0.5 * t)

    def fold(e):
        # Contiguous split of the major (sublane) axis + sum over the leading
        # vreg-batch axis: pure VPU adds into (8,128), no cross-lane XLU.
        return jnp.sum(e.reshape(tm // SUBLANES, SUBLANES, LANES), axis=0)

    @pl.when(valid >= tm)            # full tile: hot path, no masking cost
    def _full():
        out_ref[...] += fold(elem)

    @pl.when(valid < tm)             # ragged last tile / dummy step: mask rows
    def _ragged():
        row = jax.lax.broadcasted_iota(jnp.int32, (tm, LANES), 0)
        out_ref[...] += fold(jnp.where(row < valid, elem, 0.0))


def _loss_size_pallas(pred, gt, *, block_rows=8192):
    """Pallas path: lane-dense (rows, 128) streaming reduction, no extra HBM passes."""
    assert pred.shape == gt.shape
    assert block_rows % SUBLANES == 0 and block_rows >= SUBLANES, \
        "block_rows must be a positive multiple of 8"

    n = int(gt.shape[0])
    total = int(math.prod(gt.shape))
    assert total % LANES == 0 and total // LANES >= SUBLANES, (
        "Pallas path requires total elements to be a multiple of 128 and >= 1024; "
        "use loss_size() for arbitrary sizes (it falls back to fused XLA).")

    rows = total // LANES
    # Free reshape (contiguous, default layout -> bitcast): no HBM copy, native dtype.
    x2 = pred.reshape(rows, LANES)
    y2 = gt.reshape(rows, LANES)

    tm = min(block_rows, (rows // SUBLANES) * SUBLANES)
    nblocks = -(-rows // tm)

    # 2-way split along a leading "parallel" axis so v7x uses both TensorCores.
    # Only split when the (at most one) duplicated clamp block is a small fraction
    # of the work; on single-core chips the axis is just an outer loop.
    n_split = 2 if (nblocks >= 2 and (nblocks % 2 == 0 or nblocks >= 8)) else 1
    kb = -(-nblocks // n_split)

    def in_map(p_, k_):
        # Clamp dummy trailing steps of the last partition to an in-bounds block;
        # the kernel masks them out via valid == 0.
        return (jnp.minimum(p_ * kb + k_, nblocks - 1), 0)

    # Double-buffered input blocks + headroom for the output slab / internal scratch.
    in_bytes = tm * LANES * (x2.dtype.itemsize + y2.dtype.itemsize)
    vmem_limit = 2 * in_bytes + (8 << 20)

    out = pl.pallas_call(
        partial(_loss_size_kernel, tm=tm, rows=rows, kb=kb),
        out_shape=jax.ShapeDtypeStruct((n_split * SUBLANES, LANES), jnp.float32),
        grid_spec=pltpu.PrefetchScalarGridSpec(
            num_scalar_prefetch=0,
            grid=(n_split, kb),
            in_specs=[
                pl.BlockSpec((tm, LANES), in_map),
                pl.BlockSpec((tm, LANES), in_map),
            ],
            out_specs=pl.BlockSpec((SUBLANES, LANES), lambda p_, k_: (p_, 0)),
        ),
        compiler_params=pltpu.CompilerParams(
            dimension_semantics=("parallel", "arbitrary"),
            vmem_limit_bytes=vmem_limit,
        ),
    )(x2, y2)

    # mean over all elements, then the module's extra /N, fused into one scale on
    # the tiny (n_split*8, 128) partial-sum slab.
    scale = 1.0 / (float(total) * float(n))
    return jnp.sum(out) * scale


def _loss_size_ref(pred, gt):
    """Pure-JAX reference (also the small / ragged-size fast path)."""
    diff = pred.astype(jnp.float32) - gt.astype(jnp.float32)
    abs_d = jnp.abs(diff)
    t = jnp.minimum(abs_d, 1.0)
    elem = t * (abs_d - 0.5 * t)
    return jnp.mean(elem) / gt.shape[0]


def loss_size(pred, gt, *, min_pallas_elems=131072):
    """Equivalent of Loss_Size.forward: F.smooth_l1_loss(pred, gt) / gt.shape[0]."""
    assert pred.shape == gt.shape
    total = math.prod(gt.shape)
    rows = total // LANES
    if total < min_pallas_elems or total % LANES != 0 or rows < SUBLANES:
        # Small or ragged totals: a fused XLA reduction is as fast or faster than
        # paying pallas_call dispatch / padding costs.
        return _loss_size_ref(pred, gt)
    return _loss_size_pallas(pred, gt)


if __name__ == "__main__":
    key = jax.random.PRNGKey(0)
    k_pred, k_gt = jax.random.split(key)

    # Object sizes in R^2: (N, 2).
    pred = jax.random.normal(k_pred, (4096, 2), dtype=jnp.float32) * 2.0
    gt = jax.random.normal(k_gt, (4096, 2), dtype=jnp.float32) * 2.0

    out = jax.block_until_ready(_loss_size_pallas(pred, gt))
    ref = jax.block_until_ready(_loss_size_ref(pred, gt))
    assert jnp.allclose(out, ref, rtol=1e-5, atol=1e-8), (out, ref)

    # Ragged row count with tiny blocks: exercises the partial-block masking, the
    # 2-way parallel split and the dummy-step clamp (rows=65, tm=8, nblocks=9).
    pred_r = jax.random.normal(k_pred, (4160, 2), dtype=jnp.float32)
    gt_r = jax.random.normal(k_gt, (4160, 2), dtype=jnp.float32)
    out_r = jax.block_until_ready(_loss_size_pallas(pred_r, gt_r, block_rows=8))
    ref_r = jax.block_until_ready(_loss_size_ref(pred_r, gt_r))
    assert jnp.allclose(out_r, ref_r, rtol=1e-5, atol=1e-8), (out_r, ref_r)

    # Native bf16 streaming (kernel upcasts per tile; no wrapper-side f32 copies).
    pred_b = pred.astype(jnp.bfloat16)
    gt_b = gt.astype(jnp.bfloat16)
    out_b = jax.block_until_ready(_loss_size_pallas(pred_b, gt_b))
    ref_b = jax.block_until_ready(_loss_size_ref(pred_b, gt_b))
    assert jnp.allclose(out_b, ref_b, rtol=1e-4, atol=1e-7), (out_b, ref_b)

    # Dispatcher: small inputs route to the fused-XLA path.
    out_d = jax.block_until_ready(loss_size(pred, gt))
    assert jnp.allclose(out_d, ref, rtol=1e-5, atol=1e-8), (out_d, ref)

    print("KERNEL_OK")
</pallas_src>

<mosaic_0001>
module attributes {stable_mosaic.version = 11 : i64} {
  func.func @_loss_size_kernel(%arg0: i32, %arg1: i32, %arg2: memref<64x128xf32, #tpu.memory_space<vmem>>, %arg3: memref<64x128xf32, #tpu.memory_space<vmem>>, %arg4: memref<8x128xf32, #tpu.memory_space<vmem>>) attributes {dimension_semantics = [#tpu.dimension_semantics<parallel>, #tpu.dimension_semantics<arbitrary>], iteration_bounds = array<i64: 1, 1>, scalar_prefetch = 0 : i64, scratch_operands = 0 : i64, tpu.core_type = #tpu.core_type<tc>, window_params = [{transform_indices = @transform_0, window_bounds = array<i64: 64, 128>}, {transform_indices = @transform_1, window_bounds = array<i64: 64, 128>}, {transform_indices = @transform_2, window_bounds = array<i64: 8, 128>}]} {
    %c0_i32 = arith.constant 0 : i32
    %0 = arith.cmpi eq, %arg1, %c0_i32 : i32
    %1 = arith.extui %0 : i1 to i32
    %c0_i32_0 = arith.constant 0 : i32
    %2 = arith.cmpi ne, %1, %c0_i32_0 : i32
    scf.if %2 {
      %cst_12 = arith.constant 0.000000e+00 : f32
      %25 = vector.broadcast %cst_12 : f32 to vector<8x128xf32>
      %c0_13 = arith.constant 0 : index
      %c0_14 = arith.constant 0 : index
      %26 = vector.load %arg4[%c0_13, %c0_14] : memref<8x128xf32, #tpu.memory_space<vmem>>, vector<8x128xf32>
      tpu.vector_store %arg4[%c0_13, %c0_14], %25 {strides = array<i32>} : memref<8x128xf32, #tpu.memory_space<vmem>>, vector<8x128xf32>,
    } else {
    }
    %c1_i32 = arith.constant 1 : i32
    %3 = arith.muli %arg0, %c1_i32 : i32
    %4 = arith.addi %3, %arg1 : i32
    %c64_i32 = arith.constant 64 : i32
    %5 = arith.muli %4, %c64_i32 : i32
    %c64_i32_1 = arith.constant 64 : i32
    %6 = arith.subi %c64_i32_1, %5 : i32
    %c0_i32_2 = arith.constant 0 : i32
    %c64_i32_3 = arith.constant 64 : i32
    %7 = arith.maxsi %c0_i32_2, %6 : i32
    %8 = arith.minsi %c64_i32_3, %7 : i32
    %c0 = arith.constant 0 : index
    %c0_4 = arith.constant 0 : index
    %9 = vector.load %arg2[%c0, %c0_4] : memref<64x128xf32, #tpu.memory_space<vmem>>, vector<64x128xf32>
    %c0_5 = arith.constant 0 : index
    %c0_6 = arith.constant 0 : index
    %10 = vector.load %arg3[%c0_5, %c0_6] : memref<64x128xf32, #tpu.memory_space<vmem>>, vector<64x128xf32>
    %11 = arith.subf %9, %10 : vector<64x128xf32>
    %12 = math.absf %11 : vector<64x128xf32>
    %cst = arith.constant 1.000000e+00 : f32
    %13 = vector.broadcast %cst : f32 to vector<64x128xf32>
    %14 = arith.minimumf %12, %13 : vector<64x128xf32>
    %cst_7 = arith.constant 5.000000e-01 : f32
    %15 = vector.broadcast %cst_7 : f32 to vector<64x128xf32>
    %16 = arith.mulf %15, %14 : vector<64x128xf32>
    %17 = arith.subf %12, %16 : vector<64x128xf32>
    %18 = arith.mulf %14, %17 : vector<64x128xf32>
    %c64_i32_8 = arith.constant 64 : i32
    %19 = arith.cmpi sge, %8, %c64_i32_8 : i32
    %20 = arith.extui %19 : i1 to i32
    %c0_i32_9 = arith.constant 0 : i32
    %21 = arith.cmpi ne, %20, %c0_i32_9 : i32
    scf.if %21 {
      %c0_12 = arith.constant 0 : index
      %c0_13 = arith.constant 0 : index
      %25 = vector.load %arg4[%c0_12, %c0_13] : memref<8x128xf32, #tpu.memory_space<vmem>>, vector<8x128xf32>
      %26 = vector.shape_cast %18 : vector<64x128xf32> to vector<8x8x128xf32>
      %cst_14 = arith.constant dense<0.000000e+00> : vector<8x128xf32>
      %27 = vector.multi_reduction <add>, %26, %cst_14 [0] : vector<8x8x128xf32> to vector<8x128xf32>
      %28 = arith.addf %25, %27 : vector<8x128xf32>
      %c0_15 = arith.constant 0 : index
      %c0_16 = arith.constant 0 : index
      %29 = vector.load %arg4[%c0_15, %c0_16] : memref<8x128xf32, #tpu.memory_space<vmem>>, vector<8x128xf32>
      tpu.vector_store %arg4[%c0_15, %c0_16], %28 {strides = array<i32>} : memref<8x128xf32, #tpu.memory_space<vmem>>, vector<8x128xf32>,
    } else {
    }
    %c64_i32_10 = arith.constant 64 : i32
    %22 = arith.cmpi slt, %8, %c64_i32_10 : i32
    %23 = arith.extui %22 : i1 to i32
    %c0_i32_11 = arith.constant 0 : i32
    %24 = arith.cmpi ne, %23, %c0_i32_11 : i32
    scf.if %24 {
      %25 = tpu.iota {dimensions = array<i32: 0>} : vector<64x128xi32>
      %c0_12 = arith.constant 0 : index
      %c0_13 = arith.constant 0 : index
      %26 = vector.load %arg4[%c0_12, %c0_13] : memref<8x128xf32, #tpu.memory_space<vmem>>, vector<8x128xf32>
      %27 = vector.broadcast %8 : i32 to vector<64x128xi32>
      %28 = arith.cmpi slt, %25, %27 : vector<64x128xi32>
      %cst_14 = arith.constant 0.000000e+00 : f32
      %29 = vector.broadcast %cst_14 : f32 to vector<64x128xf32>
      %30 = arith.select %28, %18, %29 : vector<64x128xi1>, vector<64x128xf32>
      %31 = vector.shape_cast %30 : vector<64x128xf32> to vector<8x8x128xf32>
      %cst_15 = arith.constant dense<0.000000e+00> : vector<8x128xf32>
      %32 = vector.multi_reduction <add>, %31, %cst_15 [0] : vector<8x8x128xf32> to vector<8x128xf32>
      %33 = arith.addf %26, %32 : vector<8x128xf32>
      %c0_16 = arith.constant 0 : index
      %c0_17 = arith.constant 0 : index
      %34 = vector.load %arg4[%c0_16, %c0_17] : memref<8x128xf32, #tpu.memory_space<vmem>>, vector<8x128xf32>
      tpu.vector_store %arg4[%c0_16, %c0_17], %33 {strides = array<i32>} : memref<8x128xf32, #tpu.memory_space<vmem>>, vector<8x128xf32>,
    } else {
    }
    return
  }
  func.func @transform_0(%arg0: i32, %arg1: i32) -> (i32, i32) {
    %c1_i32 = arith.constant 1 : i32
    %0 = arith.muli %arg0, %c1_i32 : i32
    %1 = arith.addi %0, %arg1 : i32
    %c0_i32 = arith.constant 0 : i32
    %2 = arith.minsi %1, %c0_i32 : i32
    %c0_i32_0 = arith.constant 0 : i32
    %c0_i32_1 = arith.constant 0 : i32
    return %2, %c0_i32_0 : i32, i32
  }
  func.func @transform_1(%arg0: i32, %arg1: i32) -> (i32, i32) {
    %c1_i32 = arith.constant 1 : i32
    %0 = arith.muli %arg0, %c1_i32 : i32
    %1 = arith.addi %0, %arg1 : i32
    %c0_i32 = arith.constant 0 : i32
    %2 = arith.minsi %1, %c0_i32 : i32
    %c0_i32_0 = arith.constant 0 : i32
    %c0_i32_1 = arith.constant 0 : i32
    return %2, %c0_i32_0 : i32, i32
  }
  func.func @transform_2(%arg0: i32, %arg1: i32) -> (i32, i32) {
    %c0_i32 = arith.constant 0 : i32
    %c0_i32_0 = arith.constant 0 : i32
    return %arg0, %c0_i32 : i32, i32
  }
}

</mosaic_0001>

<llo_original>
// kernel: tpu_custom_call.1
$region0: #{tpu_custom_call.1}
  #allocation0 [shape = 'u32[]', space=smem, size = 0x4, offset = 0x4, fixed_abs, tag = 'smem constant byte address 0x4 - core index']
  #allocation1 [shape = 'u32[72,128]{1,0:T(1,128)}', space=vmem, size = 0x9000, scoped, tag = 'internal scratch']
  %s0 = inlined_call_operand.hbm [shape: f32[64,128], index: 0, kind: input, shape index: {}]
  %s1 = inlined_call_operand.hbm [shape: f32[64,128], index: 1, kind: input, shape index: {}]
  %s2 = inlined_call_operand.hbm [shape: f32[8,128], index: 2, kind: output, shape index: {}]
  %s3 = sld [smem:[#allocation0]]
  $region38: #{tpu_custom_call.1} parent=0
    _
  %s5 = ssub.s32 1, %s3
  %s6 = scalar_select 0, %s5, %s3
  $region1: #{tpu_custom_call.1} parent=0
    #allocation2 [shape = 'u8[32768]{0}', space=vmem, size = 0x8000, scoped, tag = 'input window, operand 0, single buffered']
    #allocation3 [shape = 's32[1]{0}', space=sflag, size = 0x4, scoped, tag = 'scoped memory for tpu_custom_call.1']
    #allocation4 [shape = 's32[1]{0}', space=sflag, size = 0x4, scoped, tag = 'scoped memory for tpu_custom_call.1']
    #allocation5 [shape = 'u8[32768]{0}', space=vmem, size = 0x8000, scoped, tag = 'input window, operand 1, single buffered']
    #allocation6 [shape = 's32[1]{0}', space=sflag, size = 0x4, scoped, tag = 'scoped memory for tpu_custom_call.1']
    #allocation7 [shape = 'u8[4096]{0}', space=vmem, size = 0x1000, scoped, tag = 'output window, operand 0, single buffered']
    %7 = vsyncpa [#allocation3], 0
    %8 = vsyncpa [#allocation6], 0
    %9 = vsyncpa [#allocation4], 0
    // Predicated region
    $region2: #{tpu_custom_call.1} parent=1 // pred_check
      _
    $region3: #{tpu_custom_call.1} parent=1 // pred_check_branch
      %11 = sbr.rel (0) target = $region5
    $region4: #{tpu_custom_call.1} parent=1 // pred_region
      %s12 = sadd.s32 0, 0
      %p13 = scmp.lt.s32.totalorder %s12, 0
      %s14 = scalar_select %p13, %s12, 0
      %s15 = smul.u32 8, %s14
      %17 = vsyncadd [#allocation3], 0
      %s18 = smul.addr %s15, 8
      %s19 = scalar_lea.hbm %s0, %s18
      %s20 = sshll.u32 %s19, 4
      %s21 = int_to_ptr.hbm [resolvable:$true] %s20
      %s22 = sshll.u32 [#allocation2], 4
      %s23 = int_to_ptr.vmem [resolvable:$true] %s22
      %28 = dma.hbm_to_vmem [thread:$0]  %s21, 1024, %s23, [#allocation3], 128, 128, 8
    $region5: #{tpu_custom_call.1} parent=1 // pred_fallthru
      _
    // Predicated region
    $region6: #{tpu_custom_call.1} parent=1 // pred_check
      _
    $region7: #{tpu_custom_call.1} parent=1 // pred_check_branch
      %30 = sbr.rel (0) target = $region9
    $region8: #{tpu_custom_call.1} parent=1 // pred_region
      %s31 = sadd.s32 0, 0
      %p32 = scmp.lt.s32.totalorder %s31, 0
      %s33 = scalar_select %p32, %s31, 0
      %s34 = smul.u32 8, %s33
      %36 = vsyncadd [#allocation6], 0
      %s37 = smul.addr %s34, 8
      %s38 = scalar_lea.hbm %s1, %s37
      %s39 = sshll.u32 %s38, 4
      %s40 = int_to_ptr.hbm [resolvable:$true] %s39
      %s41 = sshll.u32 [#allocation5], 4
      %s42 = int_to_ptr.vmem [resolvable:$true] %s41
      %47 = dma.hbm_to_vmem [thread:$0]  %s40, 1024, %s42, [#allocation6], 128, 128, 8
    $region9: #{tpu_custom_call.1} parent=1 // pred_fallthru
      _
    // Predicated region
    $region10: #{tpu_custom_call.1} parent=1 // pred_check
      _
    $region11: #{tpu_custom_call.1} parent=1 // pred_check_branch
      %49 = sbr.rel (0) target = $region13
    $region12: #{tpu_custom_call.1} parent=1 // pred_region
      %51 = dma.done [#allocation3], 1024
    $region13: #{tpu_custom_call.1} parent=1 // pred_fallthru
      _
    // Predicated region
    $region14: #{tpu_custom_call.1} parent=1 // pred_check
      _
    $region15: #{tpu_custom_call.1} parent=1 // pred_check_branch
      %53 = sbr.rel (0) target = $region17
    $region16: #{tpu_custom_call.1} parent=1 // pred_region
      %55 = dma.done [#allocation6], 1024
    $region17: #{tpu_custom_call.1} parent=1 // pred_fallthru
      _
    %s56 = sadd.s32 0, 0
    %p57 = scmp.lt.s32.totalorder %s56, 0
    %s58 = scalar_select %p57, %s56, 0
    %s59 = smul.u32 8, %s58
    %s60 = sadd.s32 0, 0
    %p61 = scmp.lt.s32.totalorder %s60, 0
    %s62 = scalar_select %p61, %s60, 0
    %s63 = smul.u32 8, %s62
    %p64 = scmp.eq.s32.totalorder 0, 0
    // Predicated region
    $region18: #{tpu_custom_call.1} parent=1 // pred_check
      %p65 = pneg %p64
    $region19: #{tpu_custom_call.1} parent=1 // pred_check_branch
      %67 = sbr.rel (%p65) target = $region21
    $region20: #{tpu_custom_call.1} parent=1 // pred_region
      %68 = vst [vmem:[#allocation7] sm:$0xff] 0.0
    $region21: #{tpu_custom_call.1} parent=1 // pred_fallthru
      _
    %s69 = sadd.s32 0, 0
    %s70 = smul.u32 %s69, 64
    %s71 = ssub.s32 64, %s70
    %p72 = scmp.gt.s32.totalorder %s71, 0
    %s73 = scalar_select %p72, %s71, 0
    %p74 = scmp.lt.s32.totalorder %s73, 64
    %s75 = scalar_select %p74, %s73, 64
    %v76 = vld [vmem:[#allocation2] sm:$0xff]
    %v77 = vld [vmem:[#allocation2 + $0x8] sm:$0xff]
    %v78 = vld [vmem:[#allocation2 + $0x10] sm:$0xff]
    %v79 = vld [vmem:[#allocation2 + $0x18] sm:$0xff]
    %v80 = vld [vmem:[#allocation2 + $0x20] sm:$0xff]
    %v81 = vld [vmem:[#allocation2 + $0x28] sm:$0xff]
    %v82 = vld [vmem:[#allocation2 + $0x30] sm:$0xff]
    %v83 = vld [vmem:[#allocation2 + $0x38] sm:$0xff]
    %v84 = vld [vmem:[#allocation5] sm:$0xff]
    %v85 = vld [vmem:[#allocation5 + $0x8] sm:$0xff]
    %v86 = vld [vmem:[#allocation5 + $0x10] sm:$0xff]
    %v87 = vld [vmem:[#allocation5 + $0x18] sm:$0xff]
    %v88 = vld [vmem:[#allocation5 + $0x20] sm:$0xff]
    %v89 = vld [vmem:[#allocation5 + $0x28] sm:$0xff]
    %v90 = vld [vmem:[#allocation5 + $0x30] sm:$0xff]
    %v91 = vld [vmem:[#allocation5 + $0x38] sm:$0xff]
    %v92 = vsub.f32 %v76, %v84
    %v93 = vsub.f32 %v77, %v85
    %v94 = vsub.f32 %v78, %v86
    %v95 = vsub.f32 %v79, %v87
    %v96 = vsub.f32 %v80, %v88
    %v97 = vsub.f32 %v81, %v89
    %v98 = vsub.f32 %v82, %v90
    %v99 = vsub.f32 %v83, %v91
    %v100 = vand.u32 2147483647, %v92
    %v101 = vand.u32 2147483647, %v93
    %v102 = vand.u32 2147483647, %v94
    %v103 = vand.u32 2147483647, %v95
    %v104 = vand.u32 2147483647, %v96
    %v105 = vand.u32 2147483647, %v97
    %v106 = vand.u32 2147483647, %v98
    %v107 = vand.u32 2147483647, %v99
    %v108 = vmin.f32 %v100, 1.0
    %v109 = vmin.f32 %v101, 1.0
    %v110 = vmin.f32 %v102, 1.0
    %v111 = vmin.f32 %v103, 1.0
    %v112 = vmin.f32 %v104, 1.0
    %v113 = vmin.f32 %v105, 1.0
    %v114 = vmin.f32 %v106, 1.0
    %v115 = vmin.f32 %v107, 1.0
    %v116 = vmul.f32 %v108, 0.5
    %v117 = vmul.f32 %v109, 0.5
    %v118 = vmul.f32 %v110, 0.5
    %v119 = vmul.f32 %v111, 0.5
    %v120 = vmul.f32 %v112, 0.5
    %v121 = vmul.f32 %v113, 0.5
    %v122 = vmul.f32 %v114, 0.5
    %v123 = vmul.f32 %v115, 0.5
    %v124 = vsub.f32 %v100, %v116
    %v125 = vsub.f32 %v101, %v117
    %v126 = vsub.f32 %v102, %v118
    %v127 = vsub.f32 %v103, %v119
    %v128 = vsub.f32 %v104, %v120
    %v129 = vsub.f32 %v105, %v121
    %v130 = vsub.f32 %v106, %v122
    %v131 = vsub.f32 %v107, %v123
    %v132 = vmul.f32 %v108, %v124
    %v133 = vmul.f32 %v109, %v125
    %v134 = vmul.f32 %v110, %v126
    %v135 = vmul.f32 %v111, %v127
    %v136 = vmul.f32 %v112, %v128
    %v137 = vmul.f32 %v113, %v129
    %v138 = vmul.f32 %v114, %v130
    %v139 = vmul.f32 %v115, %v131
    %p140 = scmp.ge.s32.totalorder %s75, 64
    // Predicated region
    $region22: #{tpu_custom_call.1} parent=1 // pred_check
      %p141 = pneg %p140
    $region23: #{tpu_custom_call.1} parent=1 // pred_check_branch
      %143 = sbr.rel (%p141) target = $region25
    $region24: #{tpu_custom_call.1} parent=1 // pred_region
      %v144 = vld [vmem:[#allocation7] sm:$0xff]
      %v145 = vadd.f32 %v132, %v133
      %v146 = vadd.f32 %v145, %v134
      %v147 = vadd.f32 %v146, %v135
      %v148 = vadd.f32 %v147, %v136
      %v149 = vadd.f32 %v148, %v137
      %v150 = vadd.f32 %v149, %v138
      %v151 = vadd.f32 %v150, %v139
      %v152 = vadd.f32 %v144, %v151
      %153 = vst [vmem:[#allocation7] sm:$0xff] %v152
    $region25: #{tpu_custom_call.1} parent=1 // pred_fallthru
      _
    %p154 = scmp.lt.s32.totalorder %s75, 64
    // Predicated region
    $region26: #{tpu_custom_call.1} parent=1 // pred_check
      %p155 = pneg %p154
    $region27: #{tpu_custom_call.1} parent=1 // pred_check_branch
      %157 = sbr.rel (%p155) target = $region29
    $region28: #{tpu_custom_call.1} parent=1 // pred_region
      %v158 = vlaneseq
      %v159 = vshrl.u32 %v158, 7
      %v160 = vadd.s32 %v159, 8
      %v161 = vadd.s32 %v159, 16
      %v162 = vadd.s32 %v159, 24
      %v163 = vadd.s32 %v159, 32
      %v164 = vadd.s32 %v159, 40
      %v165 = vadd.s32 %v159, 48
      %v166 = vadd.s32 %v159, 56
      %v167 = vld [vmem:[#allocation7] sm:$0xff]
      %v168 = vstv %s75
      %vm169 = vcmp.lt.s32.totalorder %v159, %v168
      %vm170 = vcmp.lt.s32.totalorder %v160, %v168
      %vm171 = vcmp.lt.s32.totalorder %v161, %v168
      %vm172 = vcmp.lt.s32.totalorder %v162, %v168
      %vm173 = vcmp.lt.s32.totalorder %v163, %v168
      %vm174 = vcmp.lt.s32.totalorder %v164, %v168
      %vm175 = vcmp.lt.s32.totalorder %v165, %v168
      %vm176 = vcmp.lt.s32.totalorder %v166, %v168
      %v177 = vsel %vm169, %v132, 0.0
      %v178 = vsel %vm170, %v133, 0.0
      %v179 = vsel %vm171, %v134, 0.0
      %v180 = vsel %vm172, %v135, 0.0
      %v181 = vsel %vm173, %v136, 0.0
      %v182 = vsel %vm174, %v137, 0.0
      %v183 = vsel %vm175, %v138, 0.0
      %v184 = vsel %vm176, %v139, 0.0
      %v185 = vadd.f32 %v177, %v178
      %v186 = vadd.f32 %v185, %v179
      %v187 = vadd.f32 %v186, %v180
      %v188 = vadd.f32 %v187, %v181
      %v189 = vadd.f32 %v188, %v182
      %v190 = vadd.f32 %v189, %v183
      %v191 = vadd.f32 %v190, %v184
      %v192 = vadd.f32 %v167, %v191
      %193 = vst [vmem:[#allocation7] sm:$0xff] %v192
    $region29: #{tpu_custom_call.1} parent=1 // pred_fallthru
      _
    // Predicated region
    $region30: #{tpu_custom_call.1} parent=1 // pred_check
      _
    $region31: #{tpu_custom_call.1} parent=1 // pred_check_branch
      %195 = sbr.rel (0) target = $region33
    $region32: #{tpu_custom_call.1} parent=1 // pred_region
      %197 = vsyncadd [#allocation4], 0
      %s199 = sshll.u32 [#allocation7], 4
      %s200 = int_to_ptr.vmem [resolvable:$true] %s199
      %s201 = sshll.u32 %s2, 4
      %s202 = int_to_ptr.hbm [resolvable:$true] %s201
      %204 = dma.vmem_to_hbm [thread:$0]  %s200, 128, %s202, [#allocation4]
    $region33: #{tpu_custom_call.1} parent=1 // pred_fallthru
      _
    // Predicated region
    $region34: #{tpu_custom_call.1} parent=1 // pred_check
      _
    $region35: #{tpu_custom_call.1} parent=1 // pred_check_branch
      %206 = sbr.rel (0) target = $region37
    $region36: #{tpu_custom_call.1} parent=1 // pred_region
      %208 = dma.done [#allocation4], 128
    $region37: #{tpu_custom_call.1} parent=1 // pred_fallthru
      _
    %209 = vsyncpa [#allocation3], 1
    %210 = vsyncpa [#allocation6], 1
    %211 = vsyncpa [#allocation4], 1

</llo_original>
